<compile_context>
chip_gen: v5e
topology: v5e:2x2
jax: 0.10.0
libtpu: 0.0.40
codegen_flags: <defaults>
</compile_context>

<pallas_src>
import functools

import numpy as np
import jax
import jax.numpy as jnp
from jax.experimental import pallas as pl
from jax.experimental.pallas import tpu as pltpu


def _conv_block_kernel(x_ref, w_ref, scale_ref, shift_ref, o_ref, xpad_ref, y_ref,
                       *, KH, pad, H, W, Cin, Cout):
    # x_ref:     (Nb, H, W*Cin)            lane-dense NHWC input block (w,c merged)
    # w_ref:     (KH, Wp*Cin, W*Cout)      banded conv weights (even-w cols, then odd-w cols)
    # scale_ref: (1, W*Cout)   f32         gamma / sqrt(var + eps), tiled over w
    # shift_ref: (1, W*Cout)   f32         beta - mean*scale + bias*scale, tiled over w
    # o_ref:     (Nb, Ho, Wo*Cout)         lane-dense output slab
    # xpad_ref:  (Nb, Hp, Wp*Cin)          VMEM scratch: zero-padded input (compute dtype)
    # y_ref:     (Nb*H, W*Cout) f32        VMEM scratch: pre-pool activations (for strided H-pool)
    Nb = x_ref.shape[0]
    Hp = H + 2 * pad
    WpC = (W + 2 * pad) * Cin
    WC = W * Cout
    Ho, Wo = H // 2, W // 2
    WoC = Wo * Cout
    M = Nb * H
    cdt = xpad_ref.dtype

    # ---- zero only the 1-pixel halo (4 thin strips); interior is fully overwritten ----
    if pad > 0:
        xpad_ref[:, :pad, :] = jnp.zeros((Nb, pad, WpC), cdt)            # top rows
        xpad_ref[:, pad + H:, :] = jnp.zeros((Nb, pad, WpC), cdt)        # bottom rows
        xpad_ref[:, :, :pad * Cin] = jnp.zeros((Nb, Hp, pad * Cin), cdt)        # left cols
        xpad_ref[:, :, (pad + W) * Cin:] = jnp.zeros((Nb, Hp, pad * Cin), cdt)  # right cols
    xpad_ref[:, pad:pad + H, pad * Cin:(pad + W) * Cin] = x_ref[...]     # interior

    # ---- conv = KH banded matmuls, f32 accumulation on the MXU ----
    # LHS rows are (n, h); lanes are (wp, ci).  RHS emits lanes ordered
    # (w-parity, wo, cout) so the W max-pool becomes a static lane-half max.
    acc = jnp.zeros((M, WC), jnp.float32)
    for kh in range(KH):
        a = xpad_ref[:, kh:kh + H, :].reshape(M, WpC)
        acc = acc + jnp.dot(a, w_ref[kh],
                            preferred_element_type=jnp.float32,
                            precision=jax.lax.Precision.HIGHEST)

    # ---- folded conv-bias + batch-norm (affine, must precede the max-pool) ----
    y_ref[...] = acc * scale_ref[...] + shift_ref[...]                   # (M, WC) f32

    # ---- 2x2 max-pool, stride 2 ----
    # H-pool: stride-2 sublane reads pair rows (n, 2j) with (n, 2j+1)  (H even).
    ye = y_ref[pl.ds(0, M // 2, stride=2), :]
    yo = y_ref[pl.ds(1, M // 2, stride=2), :]
    m = jnp.maximum(ye, yo)                                              # (M/2, WC)
    # W-pool: even-w columns live in lanes [:WoC], odd-w in [WoC:].  ReLU commutes with max.
    z = jnp.maximum(jnp.maximum(m[:, :WoC], m[:, WoC:]), 0.0)            # (M/2, WoC)

    # ---- single lane-dense store (leading-dim-only reshape) ----
    o_ref[...] = z.reshape(Nb, Ho, WoC).astype(o_ref.dtype)

    # Dropout2d: identity in eval mode.
    # TODO(synk): training-mode Dropout2d not implemented.


def _num_batch_blocks(N):
    """Split the batch over the grid only on 2-TensorCore parts (v7x-style)."""
    try:
        kind = jax.devices()[0].device_kind.lower()
    except Exception:
        kind = ""
    if N >= 2 and N % 2 == 0 and "v7" in kind:
        return 2
    return 1


def conv_block_forward(x_nchw, w_oihw, bias, gamma, beta,
                       running_mean, running_var, eps=1e-5, padding=1,
                       compute_dtype=jnp.float32):
    N, Cin, H, W = x_nchw.shape
    Cout, Cin2, KH, KW = w_oihw.shape
    assert Cin2 == Cin
    assert H % 2 == 0 and W % 2 == 0, "MaxPool2d(2,2) path assumes even spatial dims"
    Ho, Wo = H // 2, W // 2
    Hp, Wp = H + 2 * padding, W + 2 * padding
    WC = W * Cout

    # ---- layout glue + parameter folding in plain JAX ----
    # x: NCHW -> (N, H, W*Cin) lane-dense slab.
    x_in = jnp.transpose(x_nchw, (0, 2, 3, 1)).reshape(N, H, W * Cin).astype(compute_dtype)

    # Banded weights B[kh][(wp,ci), (w,co)] = Wt[co,ci,kh, wp-w] for 0 <= wp-w < KW, else 0,
    # with output columns reordered as (even w ... , odd w ...) so the kernel's W-pool is a
    # static lane-half max.
    sel = np.zeros((KW, Wp, W), np.float32)
    for kw in range(KW):
        for w in range(W):
            sel[kw, w + kw, w] = 1.0
    wt = jnp.transpose(w_oihw, (2, 3, 1, 0)).astype(jnp.float32)          # (KH, KW, Cin, Cout)
    bw = jnp.einsum('xpw,hxio->hpiwo', jnp.asarray(sel), wt)              # (KH, Wp, Cin, W, Cout)
    w_order = np.concatenate([np.arange(0, W, 2), np.arange(1, W, 2)])
    bw = bw[:, :, :, w_order, :].reshape(KH, Wp * Cin, WC).astype(compute_dtype)

    scale = gamma / jnp.sqrt(running_var + eps)
    shift = beta - running_mean * scale + bias * scale                    # conv bias folded in
    scale_l = jnp.tile(scale, W).reshape(1, WC).astype(jnp.float32)       # per-lane (co fastest)
    shift_l = jnp.tile(shift, W).reshape(1, WC).astype(jnp.float32)

    n_steps = _num_batch_blocks(N)
    Nb = N // n_steps

    kernel = functools.partial(_conv_block_kernel, KH=KH, pad=padding,
                               H=H, W=W, Cin=Cin, Cout=Cout)

    out_slab = pl.pallas_call(
        kernel,
        out_shape=jax.ShapeDtypeStruct((N, Ho, Wo * Cout), x_nchw.dtype),
        grid_spec=pltpu.PrefetchScalarGridSpec(
            num_scalar_prefetch=0,
            grid=(n_steps,),
            in_specs=[
                pl.BlockSpec((Nb, H, W * Cin), lambda i: (i, 0, 0)),
                pl.BlockSpec((KH, Wp * Cin, WC), lambda i: (0, 0, 0)),
                pl.BlockSpec((1, WC), lambda i: (0, 0)),
                pl.BlockSpec((1, WC), lambda i: (0, 0)),
            ],
            out_specs=pl.BlockSpec((Nb, Ho, Wo * Cout), lambda i: (i, 0, 0)),
            scratch_shapes=[
                pltpu.VMEM((Nb, Hp, Wp * Cin), compute_dtype),   # padded input (halo-zeroed)
                pltpu.VMEM((Nb * H, WC), jnp.float32),           # pre-pool activations
            ],
        ),
        compiler_params=pltpu.CompilerParams(dimension_semantics=("parallel",)),
    )(x_in, bw, scale_l, shift_l)

    # lane-dense slab -> NCHW
    return jnp.transpose(out_slab.reshape(N, Ho, Wo, Cout), (0, 3, 1, 2))


def conv_block_reference(x, w, b, gamma, beta, mean, var, eps=1e-5):
    """Plain-JAX reference (same eval-mode semantics)."""
    y = jax.lax.conv_general_dilated(
        x, w, window_strides=(1, 1), padding=((1, 1), (1, 1)),
        dimension_numbers=("NCHW", "OIHW", "NCHW"),
        precision=jax.lax.Precision.HIGHEST)
    y = y + b[None, :, None, None]
    y = (y - mean[None, :, None, None]) / jnp.sqrt(var[None, :, None, None] + eps)
    y = y * gamma[None, :, None, None] + beta[None, :, None, None]
    y = jnp.maximum(y, 0.0)
    y = jax.lax.reduce_window(y, -jnp.inf, jax.lax.max,
                              (1, 1, 2, 2), (1, 1, 2, 2), "VALID")
    return y


if __name__ == "__main__":
    # Small shapes consistent with the module: batch=2, in_channels=4,
    # out_channels=8, spatial 16x16, kernel 3x3 pad 1.
    N, Cin, Cout, H, W, KH, KW = 2, 4, 8, 16, 16, 3, 3

    key = jax.random.PRNGKey(0)
    kx, kw, kb, kg, kbeta = jax.random.split(key, 5)

    x = jax.random.normal(kx, (N, Cin, H, W), dtype=jnp.float32)
    fan_in = Cin * KH * KW
    w_conv = jax.random.uniform(kw, (Cout, Cin, KH, KW), dtype=jnp.float32,
                                minval=-1.0, maxval=1.0) / jnp.sqrt(fan_in)
    b_conv = jax.random.uniform(kb, (Cout,), dtype=jnp.float32,
                                minval=-1.0, maxval=1.0) / jnp.sqrt(fan_in)
    gamma = 1.0 + 0.1 * jax.random.normal(kg, (Cout,), dtype=jnp.float32)
    beta = 0.1 * jax.random.normal(kbeta, (Cout,), dtype=jnp.float32)
    running_mean = jnp.zeros((Cout,), dtype=jnp.float32)
    running_var = jnp.ones((Cout,), dtype=jnp.float32)

    out = conv_block_forward(x, w_conv, b_conv, gamma, beta,
                             running_mean, running_var)
    out = jax.block_until_ready(out)

    ref = conv_block_reference(x, w_conv, b_conv, gamma, beta,
                               running_mean, running_var)
    ref = jax.block_until_ready(ref)

    assert out.shape == (N, Cout, H // 2, W // 2), out.shape
    assert jnp.allclose(out, ref, atol=1e-3, rtol=1e-3), \
        float(jnp.max(jnp.abs(out - ref)))

    print("KERNEL_OK")
</pallas_src>

<mosaic_0001>
module attributes {stable_mosaic.version = 11 : i64} {
  func.func @_conv_block_kernel(%arg0: i32, %arg1: memref<2x16x64xf32, #tpu.memory_space<vmem>>, %arg2: memref<3x72x128xf32, #tpu.memory_space<vmem>>, %arg3: memref<1x128xf32, #tpu.memory_space<vmem>>, %arg4: memref<1x128xf32, #tpu.memory_space<vmem>>, %arg5: memref<2x8x64xf32, #tpu.memory_space<vmem>>, %arg6: memref<2x18x72xf32, #tpu.memory_space<vmem>>, %arg7: memref<32x128xf32, #tpu.memory_space<vmem>>) attributes {dimension_semantics = [#tpu.dimension_semantics<parallel>], iteration_bounds = array<i64: 1>, scalar_prefetch = 0 : i64, scratch_operands = 2 : i64, tpu.core_type = #tpu.core_type<tc>, window_params = [{transform_indices = @transform_0, window_bounds = array<i64: 2, 16, 64>}, {pipeline_mode = #tpu.pipeline_mode<synchronous>, transform_indices = @transform_1, window_bounds = array<i64: 3, 72, 128>}, {pipeline_mode = #tpu.pipeline_mode<synchronous>, transform_indices = @transform_2, window_bounds = array<i64: 1, 128>}, {pipeline_mode = #tpu.pipeline_mode<synchronous>, transform_indices = @transform_3, window_bounds = array<i64: 1, 128>}, {transform_indices = @transform_4, window_bounds = array<i64: 2, 8, 64>}]} {
    %cst = arith.constant 0.000000e+00 : f32
    %0 = vector.broadcast %cst : f32 to vector<2x1x72xf32>
    %c0 = arith.constant 0 : index
    %c0_0 = arith.constant 0 : index
    %c0_1 = arith.constant 0 : index
    %1 = vector.load %arg6[%c0, %c0_0, %c0_1] : memref<2x18x72xf32, #tpu.memory_space<vmem>>, vector<2x1x72xf32>
    tpu.vector_store %arg6[%c0, %c0_0, %c0_1], %0 {strides = array<i32>} : memref<2x18x72xf32, #tpu.memory_space<vmem>>, vector<2x1x72xf32>,
    %cst_2 = arith.constant 0.000000e+00 : f32
    %2 = vector.broadcast %cst_2 : f32 to vector<2x1x72xf32>
    %c0_3 = arith.constant 0 : index
    %c17 = arith.constant 17 : index
    %c0_4 = arith.constant 0 : index
    %3 = vector.load %arg6[%c0_3, %c17, %c0_4] : memref<2x18x72xf32, #tpu.memory_space<vmem>>, vector<2x1x72xf32>
    tpu.vector_store %arg6[%c0_3, %c17, %c0_4], %2 {strides = array<i32>} : memref<2x18x72xf32, #tpu.memory_space<vmem>>, vector<2x1x72xf32>,
    %cst_5 = arith.constant 0.000000e+00 : f32
    %4 = vector.broadcast %cst_5 : f32 to vector<2x18x4xf32>
    %c0_6 = arith.constant 0 : index
    %c0_7 = arith.constant 0 : index
    %c0_8 = arith.constant 0 : index
    %5 = vector.load %arg6[%c0_6, %c0_7, %c0_8] : memref<2x18x72xf32, #tpu.memory_space<vmem>>, vector<2x18x4xf32>
    tpu.vector_store %arg6[%c0_6, %c0_7, %c0_8], %4 {strides = array<i32>} : memref<2x18x72xf32, #tpu.memory_space<vmem>>, vector<2x18x4xf32>,
    %cst_9 = arith.constant 0.000000e+00 : f32
    %6 = vector.broadcast %cst_9 : f32 to vector<2x18x4xf32>
    %c0_10 = arith.constant 0 : index
    %c0_11 = arith.constant 0 : index
    %c68 = arith.constant 68 : index
    %7 = vector.load %arg6[%c0_10, %c0_11, %c68] : memref<2x18x72xf32, #tpu.memory_space<vmem>>, vector<2x18x4xf32>
    tpu.vector_store %arg6[%c0_10, %c0_11, %c68], %6 {strides = array<i32>} : memref<2x18x72xf32, #tpu.memory_space<vmem>>, vector<2x18x4xf32>,
    %c0_12 = arith.constant 0 : index
    %c0_13 = arith.constant 0 : index
    %c0_14 = arith.constant 0 : index
    %8 = vector.load %arg1[%c0_12, %c0_13, %c0_14] : memref<2x16x64xf32, #tpu.memory_space<vmem>>, vector<2x16x64xf32>
    %c0_15 = arith.constant 0 : index
    %c1 = arith.constant 1 : index
    %c4 = arith.constant 4 : index
    %9 = vector.load %arg6[%c0_15, %c1, %c4] : memref<2x18x72xf32, #tpu.memory_space<vmem>>, vector<2x16x64xf32>
    tpu.vector_store %arg6[%c0_15, %c1, %c4], %8 {strides = array<i32>} : memref<2x18x72xf32, #tpu.memory_space<vmem>>, vector<2x16x64xf32>,
    %cst_16 = arith.constant 0.000000e+00 : f32
    %10 = vector.broadcast %cst_16 : f32 to vector<32x128xf32>
    %c0_17 = arith.constant 0 : index
    %c0_18 = arith.constant 0 : index
    %c0_19 = arith.constant 0 : index
    %11 = vector.load %arg6[%c0_17, %c0_18, %c0_19] : memref<2x18x72xf32, #tpu.memory_space<vmem>>, vector<2x16x72xf32>
    %12 = vector.shape_cast %11 : vector<2x16x72xf32> to vector<32x72xf32>
    %c0_20 = arith.constant 0 : index
    %c0_21 = arith.constant 0 : index
    %c0_22 = arith.constant 0 : index
    %13 = vector.load %arg2[%c0_20, %c0_21, %c0_22] : memref<3x72x128xf32, #tpu.memory_space<vmem>>, vector<1x72x128xf32>
    %14 = vector.shape_cast %13 : vector<1x72x128xf32> to vector<72x128xf32>
    %cst_23 = arith.constant dense<0.000000e+00> : vector<32x128xf32>
    %15 = tpu.matmul %12, %14, %cst_23 {dimension_numbers = #tpu.dot_dimension_numbers<[1], [0], [0], [1], [0, 0, 1, 1], [], []>, precision = #tpu.contract_precision<fp32>} : vector<32x72xf32>, vector<72x128xf32>, vector<32x128xf32> -> vector<32x128xf32>
    %16 = arith.addf %10, %15 : vector<32x128xf32>
    %c0_24 = arith.constant 0 : index
    %c1_25 = arith.constant 1 : index
    %c0_26 = arith.constant 0 : index
    %17 = vector.load %arg6[%c0_24, %c1_25, %c0_26] : memref<2x18x72xf32, #tpu.memory_space<vmem>>, vector<2x16x72xf32>
    %18 = vector.shape_cast %17 : vector<2x16x72xf32> to vector<32x72xf32>
    %c1_27 = arith.constant 1 : index
    %c0_28 = arith.constant 0 : index
    %c0_29 = arith.constant 0 : index
    %19 = vector.load %arg2[%c1_27, %c0_28, %c0_29] : memref<3x72x128xf32, #tpu.memory_space<vmem>>, vector<1x72x128xf32>
    %20 = vector.shape_cast %19 : vector<1x72x128xf32> to vector<72x128xf32>
    %cst_30 = arith.constant dense<0.000000e+00> : vector<32x128xf32>
    %21 = tpu.matmul %18, %20, %cst_30 {dimension_numbers = #tpu.dot_dimension_numbers<[1], [0], [0], [1], [0, 0, 1, 1], [], []>, precision = #tpu.contract_precision<fp32>} : vector<32x72xf32>, vector<72x128xf32>, vector<32x128xf32> -> vector<32x128xf32>
    %22 = arith.addf %16, %21 : vector<32x128xf32>
    %c0_31 = arith.constant 0 : index
    %c2 = arith.constant 2 : index
    %c0_32 = arith.constant 0 : index
    %23 = vector.load %arg6[%c0_31, %c2, %c0_32] : memref<2x18x72xf32, #tpu.memory_space<vmem>>, vector<2x16x72xf32>
    %24 = vector.shape_cast %23 : vector<2x16x72xf32> to vector<32x72xf32>
    %c2_33 = arith.constant 2 : index
    %c0_34 = arith.constant 0 : index
    %c0_35 = arith.constant 0 : index
    %25 = vector.load %arg2[%c2_33, %c0_34, %c0_35] : memref<3x72x128xf32, #tpu.memory_space<vmem>>, vector<1x72x128xf32>
    %26 = vector.shape_cast %25 : vector<1x72x128xf32> to vector<72x128xf32>
    %cst_36 = arith.constant dense<0.000000e+00> : vector<32x128xf32>
    %27 = tpu.matmul %24, %26, %cst_36 {dimension_numbers = #tpu.dot_dimension_numbers<[1], [0], [0], [1], [0, 0, 1, 1], [], []>, precision = #tpu.contract_precision<fp32>} : vector<32x72xf32>, vector<72x128xf32>, vector<32x128xf32> -> vector<32x128xf32>
    %28 = arith.addf %22, %27 : vector<32x128xf32>
    %c0_37 = arith.constant 0 : index
    %c0_38 = arith.constant 0 : index
    %29 = vector.load %arg3[%c0_37, %c0_38] : memref<1x128xf32, #tpu.memory_space<vmem>>, vector<1x128xf32>
    %30 = vector.broadcast %29 : vector<1x128xf32> to vector<32x128xf32>
    %31 = arith.mulf %28, %30 : vector<32x128xf32>
    %c0_39 = arith.constant 0 : index
    %c0_40 = arith.constant 0 : index
    %32 = vector.load %arg4[%c0_39, %c0_40] : memref<1x128xf32, #tpu.memory_space<vmem>>, vector<1x128xf32>
    %33 = vector.broadcast %32 : vector<1x128xf32> to vector<32x128xf32>
    %34 = arith.addf %31, %33 : vector<32x128xf32>
    %c0_41 = arith.constant 0 : index
    %c0_42 = arith.constant 0 : index
    %35 = vector.load %arg7[%c0_41, %c0_42] : memref<32x128xf32, #tpu.memory_space<vmem>>, vector<32x128xf32>
    tpu.vector_store %arg7[%c0_41, %c0_42], %34 {strides = array<i32>} : memref<32x128xf32, #tpu.memory_space<vmem>>, vector<32x128xf32>,
    %c0_43 = arith.constant 0 : index
    %c0_44 = arith.constant 0 : index
    %36 = tpu.strided_load %arg7[%c0_43, %c0_44] {strides = array<i32: 2, 1>} : memref<32x128xf32, #tpu.memory_space<vmem>>, vector<16x128xf32>
    %c1_45 = arith.constant 1 : index
    %c0_46 = arith.constant 0 : index
    %37 = tpu.strided_load %arg7[%c1_45, %c0_46] {strides = array<i32: 2, 1>} : memref<32x128xf32, #tpu.memory_space<vmem>>, vector<16x128xf32>
    %38 = arith.maximumf %36, %37 : vector<16x128xf32>
    %39 = vector.extract_strided_slice %38 {offsets = [0, 0], sizes = [16, 64], strides = [1, 1]} : vector<16x128xf32> to vector<16x64xf32>
    %40 = vector.extract_strided_slice %38 {offsets = [0, 64], sizes = [16, 64], strides = [1, 1]} : vector<16x128xf32> to vector<16x64xf32>
    %41 = arith.maximumf %39, %40 : vector<16x64xf32>
    %cst_47 = arith.constant 0.000000e+00 : f32
    %42 = vector.broadcast %cst_47 : f32 to vector<16x64xf32>
    %43 = arith.maximumf %41, %42 : vector<16x64xf32>
    %44 = vector.shape_cast %43 : vector<16x64xf32> to vector<2x8x64xf32>
    %c0_48 = arith.constant 0 : index
    %c0_49 = arith.constant 0 : index
    %c0_50 = arith.constant 0 : index
    %45 = vector.load %arg5[%c0_48, %c0_49, %c0_50] : memref<2x8x64xf32, #tpu.memory_space<vmem>>, vector<2x8x64xf32>
    tpu.vector_store %arg5[%c0_48, %c0_49, %c0_50], %44 {strides = array<i32>} : memref<2x8x64xf32, #tpu.memory_space<vmem>>, vector<2x8x64xf32>,
    return
  }
  func.func @transform_0(%arg0: i32) -> (i32, i32, i32) {
    %c0_i32 = arith.constant 0 : i32
    %c0_i32_0 = arith.constant 0 : i32
    %c0_i32_1 = arith.constant 0 : i32
    return %arg0, %c0_i32, %c0_i32_0 : i32, i32, i32
  }
  func.func @transform_1(%arg0: i32) -> (i32, i32, i32) {
    %c0_i32 = arith.constant 0 : i32
    %c0_i32_0 = arith.constant 0 : i32
    %c0_i32_1 = arith.constant 0 : i32
    %c0_i32_2 = arith.constant 0 : i32
    return %c0_i32, %c0_i32_0, %c0_i32_1 : i32, i32, i32
  }
  func.func @transform_2(%arg0: i32) -> (i32, i32) {
    %c0_i32 = arith.constant 0 : i32
    %c0_i32_0 = arith.constant 0 : i32
    %c0_i32_1 = arith.constant 0 : i32
    return %c0_i32, %c0_i32_0 : i32, i32
  }
  func.func @transform_3(%arg0: i32) -> (i32, i32) {
    %c0_i32 = arith.constant 0 : i32
    %c0_i32_0 = arith.constant 0 : i32
    %c0_i32_1 = arith.constant 0 : i32
    return %c0_i32, %c0_i32_0 : i32, i32
  }
  func.func @transform_4(%arg0: i32) -> (i32, i32, i32) {
    %c0_i32 = arith.constant 0 : i32
    %c0_i32_0 = arith.constant 0 : i32
    %c0_i32_1 = arith.constant 0 : i32
    return %arg0, %c0_i32, %c0_i32_0 : i32, i32, i32
  }
}

</mosaic_0001>

<llo_original>
// kernel: tpu_custom_call.1
$region0: #{tpu_custom_call.1}
  #allocation0 [shape = 'u32[]', space=smem, size = 0x4, offset = 0x4, fixed_abs, tag = 'smem constant byte address 0x4 - core index']
  #allocation1 [shape = 'u32[72,128]{1,0:T(1,128)}', space=vmem, size = 0x9000, scoped, tag = 'internal scratch']
  #allocation2 [shape = 'f32[2,18,72]{2,1,0:T(8,128)}', space=vmem, size = 0x6000, scoped, tag = 'scratch operand']
  #allocation3 [shape = 'f32[32,128]{1,0:T(8,128)}', space=vmem, size = 0x4000, scoped, tag = 'scratch operand']
  %s0 = inlined_call_operand.hbm [shape: f32[2,16,64], index: 0, kind: input, shape index: {}]
  %s1 = inlined_call_operand.hbm [shape: f32[3,72,128], index: 1, kind: input, shape index: {}]
  %s2 = inlined_call_operand.vmem [shape: f32[1,128], index: 2, kind: input, shape index: {}]
  %s3 = inlined_call_operand.vmem [shape: f32[1,128], index: 3, kind: input, shape index: {}]
  %s4 = inlined_call_operand.hbm [shape: f32[2,8,64], index: 4, kind: output, shape index: {}]
  %s5 = sld [smem:[#allocation0]]
  $region34: #{tpu_custom_call.1} parent=0
    _
  %s7 = ssub.s32 1, %s5
  %s8 = scalar_select 0, %s7, %s5
  $region1: #{tpu_custom_call.1} parent=0
    #allocation4 [shape = 'u8[16384]{0}', space=vmem, size = 0x4000, scoped, tag = 'input window, operand 0, single buffered']
    #allocation5 [shape = 's32[1]{0}', space=sflag, size = 0x4, scoped, tag = 'scoped memory for tpu_custom_call.1']
    #allocation6 [shape = 's32[1]{0}', space=sflag, size = 0x4, scoped, tag = 'scoped memory for tpu_custom_call.1']
    #allocation7 [shape = 'u8[110592]{0}', space=vmem, size = 0x1b000, scoped, tag = 'input window, operand 1, single buffered']
    #allocation8 [shape = 's32[1]{0}', space=sflag, size = 0x4, scoped, tag = 'scoped memory for tpu_custom_call.1']
    #allocation9 [shape = 'u8[8192]{0}', space=vmem, size = 0x2000, scoped, tag = 'output window, operand 0, single buffered']
    %9 = vsyncpa [#allocation5], 0
    %10 = vsyncpa [#allocation8], 0
    %11 = vsyncpa [#allocation6], 0
    // Predicated region
    $region2: #{tpu_custom_call.1} parent=1 // pred_check
      _
    $region3: #{tpu_custom_call.1} parent=1 // pred_check_branch
      %13 = sbr.rel (0) target = $region5
    $region4: #{tpu_custom_call.1} parent=1 // pred_region
      %15 = vsyncadd [#allocation5], 0
      %s16 = sshll.u32 %s0, 4
      %s17 = int_to_ptr.hbm [resolvable:$true] %s16
      %s18 = sshll.u32 [#allocation4], 4
      %s19 = int_to_ptr.vmem [resolvable:$true] %s18
      %24 = dma.hbm_to_vmem [thread:$0]  %s17, 512, %s19, [#allocation5], 128, 128, 8
    $region5: #{tpu_custom_call.1} parent=1 // pred_fallthru
      _
    // Predicated region
    $region6: #{tpu_custom_call.1} parent=1 // pred_check
      _
    $region7: #{tpu_custom_call.1} parent=1 // pred_check_branch
      %26 = sbr.rel (0) target = $region9
    $region8: #{tpu_custom_call.1} parent=1 // pred_region
      %28 = vsyncadd [#allocation8], 0
      %s29 = sshll.u32 %s1, 4
      %s30 = int_to_ptr.hbm [resolvable:$true] %s29
      %s31 = sshll.u32 [#allocation7], 4
      %s32 = int_to_ptr.vmem [resolvable:$true] %s31
      %37 = dma.hbm_to_vmem [thread:$0]  %s30, 3456, %s32, [#allocation8], 128, 128, 8
    $region9: #{tpu_custom_call.1} parent=1 // pred_fallthru
      _
    // Predicated region
    $region10: #{tpu_custom_call.1} parent=1 // pred_check
      _
    $region11: #{tpu_custom_call.1} parent=1 // pred_check_branch
      %39 = sbr.rel (0) target = $region13
    $region12: #{tpu_custom_call.1} parent=1 // pred_region
      _
    $region13: #{tpu_custom_call.1} parent=1 // pred_fallthru
      _
    // Predicated region
    $region14: #{tpu_custom_call.1} parent=1 // pred_check
      _
    $region15: #{tpu_custom_call.1} parent=1 // pred_check_branch
      %41 = sbr.rel (0) target = $region17
    $region16: #{tpu_custom_call.1} parent=1 // pred_region
      _
    $region17: #{tpu_custom_call.1} parent=1 // pred_fallthru
      _
    // Predicated region
    $region18: #{tpu_custom_call.1} parent=1 // pred_check
      _
    $region19: #{tpu_custom_call.1} parent=1 // pred_check_branch
      %43 = sbr.rel (0) target = $region21
    $region20: #{tpu_custom_call.1} parent=1 // pred_region
      %45 = dma.done [#allocation5], 512
    $region21: #{tpu_custom_call.1} parent=1 // pred_fallthru
      _
    // Predicated region
    $region22: #{tpu_custom_call.1} parent=1 // pred_check
      _
    $region23: #{tpu_custom_call.1} parent=1 // pred_check_branch
      %47 = sbr.rel (0) target = $region25
    $region24: #{tpu_custom_call.1} parent=1 // pred_region
      %49 = dma.done [#allocation8], 3456
    $region25: #{tpu_custom_call.1} parent=1 // pred_fallthru
      _
    %vm50 = vcmask 581632
    %51 = vst.msk [vmem:[#allocation2] sm:$0x1] %vm50, 0.0
    %52 = vst.msk [vmem:[#allocation2 + $0x18] sm:$0x1] %vm50, 0.0
    %53 = vst.msk [vmem:[#allocation2 + $0x11] sm:$0x1] %vm50, 0.0
    %54 = vst.msk [vmem:[#allocation2 + $0x29] sm:$0x1] %vm50, 0.0
    %vm55 = vcmask 31744
    %56 = vst.msk [vmem:[#allocation2] sm:$0xff] %vm55, 0.0
    %57 = vst.msk [vmem:[#allocation2 + $0x8] sm:$0xff] %vm55, 0.0
    %vm58 = vcmask 25600
    %59 = vst.msk [vmem:[#allocation2 + $0x10] sm:$0x3] %vm58, 0.0
    %60 = vst.msk [vmem:[#allocation2 + $0x18] sm:$0xff] %vm55, 0.0
    %61 = vst.msk [vmem:[#allocation2 + $0x20] sm:$0xff] %vm55, 0.0
    %62 = vst.msk [vmem:[#allocation2 + $0x28] sm:$0x3] %vm58, 0.0
    %vm63 = vcmask 589344
    %64 = vst.msk [vmem:[#allocation2] sm:$0xff] %vm63, 0.0
    %65 = vst.msk [vmem:[#allocation2 + $0x8] sm:$0xff] %vm63, 0.0
    %vm66 = vcmask 583200
    %67 = vst.msk [vmem:[#allocation2 + $0x10] sm:$0x3] %vm66, 0.0
    %68 = vst.msk [vmem:[#allocation2 + $0x18] sm:$0xff] %vm63, 0.0
    %69 = vst.msk [vmem:[#allocation2 + $0x20] sm:$0xff] %vm63, 0.0
    %70 = vst.msk [vmem:[#allocation2 + $0x28] sm:$0x3] %vm66, 0.0
    %v71 = vld [vmem:[#allocation4] sm:$0xff]
    %v72 = vld [vmem:[#allocation4 + $0x8] sm:$0xff]
    %v73 = vld [vmem:[#allocation4 + $0x10] sm:$0xff]
    %v74 = vld [vmem:[#allocation4 + $0x18] sm:$0xff]
    %79 = vrot.lane.b32.xlu0 %v71, 4
    %v80 = vpop.permute.xlu0 %79
    %81 = vrot.lane.b32.xlu0 %v72, 4
    %v82 = vpop.permute.xlu0 %81
    %83 = vrot.lane.b32.xlu0 %v73, 4
    %v84 = vpop.permute.xlu0 %83
    %85 = vrot.lane.b32.xlu0 %v74, 4
    %v86 = vpop.permute.xlu0 %85
    %vm91 = vcmask 556064
    %92 = vst.msk [vmem:[#allocation2 + $0x1] sm:$0xff] %vm91, %v80
    %93 = vst.msk [vmem:[#allocation2 + $0x9] sm:$0xff] %vm91, %v82
    %94 = vst.msk [vmem:[#allocation2 + $0x19] sm:$0xff] %vm91, %v84
    %95 = vst.msk [vmem:[#allocation2 + $0x21] sm:$0xff] %vm91, %v86
    %v96 = vld [vmem:[#allocation2] sm:$0xff]
    %v97 = vld [vmem:[#allocation2 + $0x8] sm:$0xff]
    %v98 = vld [vmem:[#allocation2 + $0x18] sm:$0xff]
    %v99 = vld [vmem:[#allocation2 + $0x20] sm:$0xff]
    %v100 = vld [vmem:[#allocation7] sm:$0xff]
    %v101 = vld [vmem:[#allocation7 + $0x8] sm:$0xff]
    %v102 = vld [vmem:[#allocation7 + $0x10] sm:$0xff]
    %v103 = vld [vmem:[#allocation7 + $0x18] sm:$0xff]
    %v104 = vld [vmem:[#allocation7 + $0x20] sm:$0xff]
    %v105 = vld [vmem:[#allocation7 + $0x28] sm:$0xff]
    %v106 = vld [vmem:[#allocation7 + $0x30] sm:$0xff]
    %v107 = vld [vmem:[#allocation7 + $0x38] sm:$0xff]
    %v108 = vld [vmem:[#allocation7 + $0x40] sm:$0xff]
    %v109 = vld [vmem:[#allocation2 + $0x1] sm:$0xff]
    %v110 = vld [vmem:[#allocation2 + $0x9] sm:$0xff]
    %v111 = vld [vmem:[#allocation2 + $0x19] sm:$0xff]
    %v112 = vld [vmem:[#allocation2 + $0x21] sm:$0xff]
    %s113 = scalar_lea.vmem [#allocation7], 72
    %v114 = vld [vmem:[%s113] sm:$0xff]
    %v115 = vld [vmem:[%s113 + $0x8] sm:$0xff]
    %v116 = vld [vmem:[%s113 + $0x10] sm:$0xff]
    %v117 = vld [vmem:[%s113 + $0x18] sm:$0xff]
    %v118 = vld [vmem:[%s113 + $0x20] sm:$0xff]
    %v119 = vld [vmem:[%s113 + $0x28] sm:$0xff]
    %v120 = vld [vmem:[%s113 + $0x30] sm:$0xff]
    %v121 = vld [vmem:[%s113 + $0x38] sm:$0xff]
    %v122 = vld [vmem:[%s113 + $0x40] sm:$0xff]
    %vm123 = vcmask 588800
    %v125 = vsel %vm123, %v109, 0
    %v128 = vsel %vm123, %v110, 0
    %v131 = vsel %vm123, %v111, 0
    %v134 = vsel %vm123, %v112, 0
    %136 = vmatpush.msra.mxu0 0.0
    %137 = vmatpush.msra.mxu0 0.0
    %138 = vmatpush.msra.mxu0 0.0
    %139 = vmatpush.msra.mxu0 0.0
    %140 = vmatpush.msra.mxu0 0.0
    %141 = vmatpush.msra.mxu0 0.0
    %142 = vmatpush.msra.mxu0 0.0
    %v143 = vand.u32 %v122, 4294901760
    %144 = vmatpush.msra.mxu0 %v143
    %v145 = vand.u32 %v121, 4294901760
    %146 = vmatpush.msra.mxu0 %v145
    %v147 = vand.u32 %v120, 4294901760
    %148 = vmatpush.msra.mxu0 %v147
    %v149 = vand.u32 %v119, 4294901760
    %150 = vmatpush.msra.mxu0 %v149
    %v151 = vand.u32 %v118, 4294901760
    %152 = vmatpush.msra.mxu0 %v151
    %v153 = vand.u32 %v117, 4294901760
    %154 = vmatpush.msra.mxu0 %v153
    %v155 = vand.u32 %v116, 4294901760
    %156 = vmatpush.msra.mxu0 %v155
    %v157 = vand.u32 %v115, 4294901760
    %158 = vmatpush.msra.mxu0 %v157
    %v159 = vand.u32 %v114, 4294901760
    %160 = vmatpush.msra.mxu0 %v159
    %v161 = vand.u32 %v125, 4294901760
    %v162 = vsub.f32 %v125, %v161
    %v163 = vand.u32 %v162, 4294901760
    %v164 = vsub.f32 %v162, %v163
    %v165 = vand.u32 %v164, 4294901760
    %166 = vmatmul.f32.gmra.mxu0 %v165
    %v167 = vpop.f32.mrf.mxu0
    %v168 = vadd.f32 0.0, %v167
    %v169 = vand.u32 %v128, 4294901760
    %v170 = vsub.f32 %v128, %v169
    %v171 = vand.u32 %v170, 4294901760
    %v172 = vsub.f32 %v170, %v171
    %v173 = vand.u32 %v172, 4294901760
    %174 = vmatmul.f32.gmra.mxu0 %v173
    %v175 = vpop.f32.mrf.mxu0
    %v176 = vadd.f32 0.0, %v175
    %v177 = vand.u32 %v131, 4294901760
    %v178 = vsub.f32 %v131, %v177
    %v179 = vand.u32 %v178, 4294901760
    %v180 = vsub.f32 %v178, %v179
    %v181 = vand.u32 %v180, 4294901760
    %182 = vmatmul.f32.gmra.mxu0 %v181
    %v183 = vpop.f32.mrf.mxu0
    %v184 = vadd.f32 0.0, %v183
    %v185 = vand.u32 %v134, 4294901760
    %v186 = vsub.f32 %v134, %v185
    %v187 = vand.u32 %v186, 4294901760
    %v188 = vsub.f32 %v186, %v187
    %v189 = vand.u32 %v188, 4294901760
    %190 = vmatmul.f32.gmra.mxu0 %v189
    %v191 = vpop.f32.mrf.mxu0
    %v192 = vadd.f32 0.0, %v191
    %193 = vdwg.mxu0
    %194 = vmatpush.msra.mxu0 0.0
    %195 = vmatpush.msra.mxu0 0.0
    %196 = vmatpush.msra.mxu0 0.0
    %197 = vmatpush.msra.mxu0 0.0
    %198 = vmatpush.msra.mxu0 0.0
    %199 = vmatpush.msra.mxu0 0.0
    %200 = vmatpush.msra.mxu0 0.0
    %v201 = vand.u32 %v122, 4294901760
    %v202 = vsub.f32 %v122, %v201
    %v203 = vand.u32 %v202, 4294901760
    %v204 = vsub.f32 %v202, %v203
    %v205 = vand.u32 %v204, 4294901760
    %206 = vmatpush.msra.mxu0 %v205
    %v207 = vand.u32 %v121, 4294901760
    %v208 = vsub.f32 %v121, %v207
    %v209 = vand.u32 %v208, 4294901760
    %v210 = vsub.f32 %v208, %v209
    %v211 = vand.u32 %v210, 4294901760
    %212 = vmatpush.msra.mxu0 %v211
    %v213 = vand.u32 %v120, 4294901760
    %v214 = vsub.f32 %v120, %v213
    %v215 = vand.u32 %v214, 4294901760
    %v216 = vsub.f32 %v214, %v215
    %v217 = vand.u32 %v216, 4294901760
    %218 = vmatpush.msra.mxu0 %v217
    %v219 = vand.u32 %v119, 4294901760
    %v220 = vsub.f32 %v119, %v219
    %v221 = vand.u32 %v220, 4294901760
    %v222 = vsub.f32 %v220, %v221
    %v223 = vand.u32 %v222, 4294901760
    %224 = vmatpush.msra.mxu0 %v223
    %v225 = vand.u32 %v118, 4294901760
    %v226 = vsub.f32 %v118, %v225
    %v227 = vand.u32 %v226, 4294901760
    %v228 = vsub.f32 %v226, %v227
    %v229 = vand.u32 %v228, 4294901760
    %230 = vmatpush.msra.mxu0 %v229
    %v231 = vand.u32 %v117, 4294901760
    %v232 = vsub.f32 %v117, %v231
    %v233 = vand.u32 %v232, 4294901760
    %v234 = vsub.f32 %v232, %v233
    %v235 = vand.u32 %v234, 4294901760
    %236 = vmatpush.msra.mxu0 %v235
    %v237 = vand.u32 %v116, 4294901760
    %v238 = vsub.f32 %v116, %v237
    %v239 = vand.u32 %v238, 4294901760
    %v240 = vsub.f32 %v238, %v239
    %v241 = vand.u32 %v240, 4294901760
    %242 = vmatpush.msra.mxu0 %v241
    %v243 = vand.u32 %v115, 4294901760
    %v244 = vsub.f32 %v115, %v243
    %v245 = vand.u32 %v244, 4294901760
    %v246 = vsub.f32 %v244, %v245
    %v247 = vand.u32 %v246, 4294901760
    %248 = vmatpush.msra.mxu0 %v247
    %v249 = vand.u32 %v114, 4294901760
    %v250 = vsub.f32 %v114, %v249
    %v251 = vand.u32 %v250, 4294901760
    %v252 = vsub.f32 %v250, %v251
    %v253 = vand.u32 %v252, 4294901760
    %254 = vmatpush.msra.mxu0 %v253
    %v255 = vand.u32 %v125, 4294901760
    %256 = vmatmul.f32.gmra.mxu0 %v255
    %v257 = vpop.f32.mrf.mxu0
    %v258 = vadd.f32 %v168, %v257
    %v259 = vand.u32 %v128, 4294901760
    %260 = vmatmul.f32.gmra.mxu0 %v259
    %v261 = vpop.f32.mrf.mxu0
    %v262 = vadd.f32 %v176, %v261
    %v263 = vand.u32 %v131, 4294901760
    %264 = vmatmul.f32.gmra.mxu0 %v263
    %v265 = vpop.f32.mrf.mxu0
    %v266 = vadd.f32 %v184, %v265
    %v267 = vand.u32 %v134, 4294901760
    %268 = vmatmul.f32.gmra.mxu0 %v267
    %v269 = vpop.f32.mrf.mxu0
    %v270 = vadd.f32 %v192, %v269
    %271 = vdwg.mxu0
    %272 = vmatpush.msra.mxu0 0.0
    %273 = vmatpush.msra.mxu0 0.0
    %274 = vmatpush.msra.mxu0 0.0
    %275 = vmatpush.msra.mxu0 0.0
    %276 = vmatpush.msra.mxu0 0.0
    %277 = vmatpush.msra.mxu0 0.0
    %278 = vmatpush.msra.mxu0 0.0
    %v279 = vand.u32 %v122, 4294901760
    %v280 = vsub.f32 %v122, %v279
    %281 = vmatpush.msra.mxu0 %v280
    %v282 = vand.u32 %v121, 4294901760
    %v283 = vsub.f32 %v121, %v282
    %284 = vmatpush.msra.mxu0 %v283
    %v285 = vand.u32 %v120, 4294901760
    %v286 = vsub.f32 %v120, %v285
    %287 = vmatpush.msra.mxu0 %v286
    %v288 = vand.u32 %v119, 4294901760
    %v289 = vsub.f32 %v119, %v288
    %290 = vmatpush.msra.mxu0 %v289
    %v291 = vand.u32 %v118, 4294901760
    %v292 = vsub.f32 %v118, %v291
    %293 = vmatpush.msra.mxu0 %v292
    %v294 = vand.u32 %v117, 4294901760
    %v295 = vsub.f32 %v117, %v294
    %296 = vmatpush.msra.mxu0 %v295
    %v297 = vand.u32 %v116, 4294901760
    %v298 = vsub.f32 %v116, %v297
    %299 = vmatpush.msra.mxu0 %v298
    %v300 = vand.u32 %v115, 4294901760
    %v301 = vsub.f32 %v115, %v300
    %302 = vmatpush.msra.mxu0 %v301
    %v303 = vand.u32 %v114, 4294901760
    %v304 = vsub.f32 %v114, %v303
    %305 = vmatpush.msra.mxu0 %v304
    %v306 = vand.u32 %v125, 4294901760
    %v307 = vsub.f32 %v125, %v306
    %308 = vmatmul.f32.gmra.mxu0 %v307
    %v309 = vpop.f32.mrf.mxu0
    %v310 = vadd.f32 %v258, %v309
    %v311 = vand.u32 %v128, 4294901760
    %v312 = vsub.f32 %v128, %v311
    %313 = vmatmul.f32.gmra.mxu0 %v312
    %v314 = vpop.f32.mrf.mxu0
    %v315 = vadd.f32 %v262, %v314
    %v316 = vand.u32 %v131, 4294901760
    %v317 = vsub.f32 %v131, %v316
    %318 = vmatmul.f32.gmra.mxu0 %v317
    %v319 = vpop.f32.mrf.mxu0
    %v320 = vadd.f32 %v266, %v319
    %v321 = vand.u32 %v134, 4294901760
    %v322 = vsub.f32 %v134, %v321
    %323 = vmatmul.f32.gmra.mxu0 %v322
    %v324 = vpop.f32.mrf.mxu0
    %v325 = vadd.f32 %v270, %v324
    %326 = vdwg.mxu0
    %327 = vmatpush.msra.mxu0 0.0
    %328 = vmatpush.msra.mxu0 0.0
    %329 = vmatpush.msra.mxu0 0.0
    %330 = vmatpush.msra.mxu0 0.0
    %331 = vmatpush.msra.mxu0 0.0
    %332 = vmatpush.msra.mxu0 0.0
    %333 = vmatpush.msra.mxu0 0.0
    %v334 = vand.u32 %v122, 4294901760
    %335 = vmatpush.msra.mxu0 %v334
    %v336 = vand.u32 %v121, 4294901760
    %337 = vmatpush.msra.mxu0 %v336
    %v338 = vand.u32 %v120, 4294901760
    %339 = vmatpush.msra.mxu0 %v338
    %v340 = vand.u32 %v119, 4294901760
    %341 = vmatpush.msra.mxu0 %v340
    %v342 = vand.u32 %v118, 4294901760
    %343 = vmatpush.msra.mxu0 %v342
    %v344 = vand.u32 %v117, 4294901760
    %345 = vmatpush.msra.mxu0 %v344
    %v346 = vand.u32 %v116, 4294901760
    %347 = vmatpush.msra.mxu0 %v346
    %v348 = vand.u32 %v115, 4294901760
    %349 = vmatpush.msra.mxu0 %v348
    %v350 = vand.u32 %v114, 4294901760
    %351 = vmatpush.msra.mxu0 %v350
    %v352 = vand.u32 %v125, 4294901760
    %v353 = vsub.f32 %v125, %v352
    %v354 = vand.u32 %v353, 4294901760
    %355 = vmatmul.f32.gmra.mxu0 %v354
    %v356 = vpop.f32.mrf.mxu0
    %v357 = vadd.f32 %v310, %v356
    %v358 = vand.u32 %v128, 4294901760
    %v359 = vsub.f32 %v128, %v358
    %v360 = vand.u32 %v359, 4294901760
    %361 = vmatmul.f32.gmra.mxu0 %v360
    %v362 = vpop.f32.mrf.mxu0
    %v363 = vadd.f32 %v315, %v362
    %v364 = vand.u32 %v131, 4294901760
    %v365 = vsub.f32 %v131, %v364
    %v366 = vand.u32 %v365, 4294901760
    %367 = vmatmul.f32.gmra.mxu0 %v366
    %v368 = vpop.f32.mrf.mxu0
    %v369 = vadd.f32 %v320, %v368
    %v370 = vand.u32 %v134, 4294901760
    %v371 = vsub.f32 %v134, %v370
    %v372 = vand.u32 %v371, 4294901760
    %373 = vmatmul.f32.gmra.mxu0 %v372
    %v374 = vpop.f32.mrf.mxu0
    %v375 = vadd.f32 %v325, %v374
    %376 = vdwg.mxu0
    %377 = vmatpush.msra.mxu0 0.0
    %378 = vmatpush.msra.mxu0 0.0
    %379 = vmatpush.msra.mxu0 0.0
    %380 = vmatpush.msra.mxu0 0.0
    %381 = vmatpush.msra.mxu0 0.0
    %382 = vmatpush.msra.mxu0 0.0
    %383 = vmatpush.msra.mxu0 0.0
    %v384 = vand.u32 %v122, 4294901760
    %v385 = vsub.f32 %v122, %v384
    %v386 = vand.u32 %v385, 4294901760
    %387 = vmatpush.msra.mxu0 %v386
    %v388 = vand.u32 %v121, 4294901760
    %v389 = vsub.f32 %v121, %v388
    %v390 = vand.u32 %v389, 4294901760
    %391 = vmatpush.msra.mxu0 %v390
    %v392 = vand.u32 %v120, 4294901760
    %v393 = vsub.f32 %v120, %v392
    %v394 = vand.u32 %v393, 4294901760
    %395 = vmatpush.msra.mxu0 %v394
    %v396 = vand.u32 %v119, 4294901760
    %v397 = vsub.f32 %v119, %v396
    %v398 = vand.u32 %v397, 4294901760
    %399 = vmatpush.msra.mxu0 %v398
    %v400 = vand.u32 %v118, 4294901760
    %v401 = vsub.f32 %v118, %v400
    %v402 = vand.u32 %v401, 4294901760
    %403 = vmatpush.msra.mxu0 %v402
    %v404 = vand.u32 %v117, 4294901760
    %v405 = vsub.f32 %v117, %v404
    %v406 = vand.u32 %v405, 4294901760
    %407 = vmatpush.msra.mxu0 %v406
    %v408 = vand.u32 %v116, 4294901760
    %v409 = vsub.f32 %v116, %v408
    %v410 = vand.u32 %v409, 4294901760
    %411 = vmatpush.msra.mxu0 %v410
    %v412 = vand.u32 %v115, 4294901760
    %v413 = vsub.f32 %v115, %v412
    %v414 = vand.u32 %v413, 4294901760
    %415 = vmatpush.msra.mxu0 %v414
    %v416 = vand.u32 %v114, 4294901760
    %v417 = vsub.f32 %v114, %v416
    %v418 = vand.u32 %v417, 4294901760
    %419 = vmatpush.msra.mxu0 %v418
    %v420 = vand.u32 %v125, 4294901760
    %421 = vmatmul.f32.gmra.mxu0 %v420
    %v422 = vpop.f32.mrf.mxu0
    %v423 = vadd.f32 %v357, %v422
    %v424 = vand.u32 %v128, 4294901760
    %425 = vmatmul.f32.gmra.mxu0 %v424
    %v426 = vpop.f32.mrf.mxu0
    %v427 = vadd.f32 %v363, %v426
    %v428 = vand.u32 %v131, 4294901760
    %429 = vmatmul.f32.gmra.mxu0 %v428
    %v430 = vpop.f32.mrf.mxu0
    %v431 = vadd.f32 %v369, %v430
    %v432 = vand.u32 %v134, 4294901760
    %433 = vmatmul.f32.gmra.mxu0 %v432
    %v434 = vpop.f32.mrf.mxu0
    %v435 = vadd.f32 %v375, %v434
    %436 = vdwg.mxu0
    %437 = vmatpush.msra.mxu0 0.0
    %438 = vmatpush.msra.mxu0 0.0
    %439 = vmatpush.msra.mxu0 0.0
    %440 = vmatpush.msra.mxu0 0.0
    %441 = vmatpush.msra.mxu0 0.0
    %442 = vmatpush.msra.mxu0 0.0
    %443 = vmatpush.msra.mxu0 0.0
    %v444 = vand.u32 %v122, 4294901760
    %445 = vmatpush.msra.mxu0 %v444
    %v446 = vand.u32 %v121, 4294901760
    %447 = vmatpush.msra.mxu0 %v446
    %v448 = vand.u32 %v120, 4294901760
    %449 = vmatpush.msra.mxu0 %v448
    %v450 = vand.u32 %v119, 4294901760
    %451 = vmatpush.msra.mxu0 %v450
    %v452 = vand.u32 %v118, 4294901760
    %453 = vmatpush.msra.mxu0 %v452
    %v454 = vand.u32 %v117, 4294901760
    %455 = vmatpush.msra.mxu0 %v454
    %v456 = vand.u32 %v116, 4294901760
    %457 = vmatpush.msra.mxu0 %v456
    %v458 = vand.u32 %v115, 4294901760
    %459 = vmatpush.msra.mxu0 %v458
    %v460 = vand.u32 %v114, 4294901760
    %461 = vmatpush.msra.mxu0 %v460
    %v462 = vand.u32 %v125, 4294901760
    %463 = vmatmul.f32.gmra.mxu0 %v462
    %v464 = vpop.f32.mrf.mxu0
    %v465 = vadd.f32 %v423, %v464
    %v466 = vand.u32 %v128, 4294901760
    %467 = vmatmul.f32.gmra.mxu0 %v466
    %v468 = vpop.f32.mrf.mxu0
    %v469 = vadd.f32 %v427, %v468
    %v470 = vand.u32 %v131, 4294901760
    %471 = vmatmul.f32.gmra.mxu0 %v470
    %v472 = vpop.f32.mrf.mxu0
    %v473 = vadd.f32 %v431, %v472
    %v474 = vand.u32 %v134, 4294901760
    %475 = vmatmul.f32.gmra.mxu0 %v474
    %v476 = vpop.f32.mrf.mxu0
    %v477 = vadd.f32 %v435, %v476
    %478 = vdwg.mxu0
    %v480 = vsel %vm123, %v96, 0
    %v483 = vsel %vm123, %v97, 0
    %v486 = vsel %vm123, %v98, 0
    %v489 = vsel %vm123, %v99, 0
    %491 = vmatpush.msra.mxu0 0.0
    %492 = vmatpush.msra.mxu0 0.0
    %493 = vmatpush.msra.mxu0 0.0
    %494 = vmatpush.msra.mxu0 0.0
    %495 = vmatpush.msra.mxu0 0.0
    %496 = vmatpush.msra.mxu0 0.0
    %497 = vmatpush.msra.mxu0 0.0
    %v498 = vand.u32 %v108, 4294901760
    %499 = vmatpush.msra.mxu0 %v498
    %v500 = vand.u32 %v107, 4294901760
    %501 = vmatpush.msra.mxu0 %v500
    %v502 = vand.u32 %v106, 4294901760
    %503 = vmatpush.msra.mxu0 %v502
    %v504 = vand.u32 %v105, 4294901760
    %505 = vmatpush.msra.mxu0 %v504
    %v506 = vand.u32 %v104, 4294901760
    %507 = vmatpush.msra.mxu0 %v506
    %v508 = vand.u32 %v103, 4294901760
    %509 = vmatpush.msra.mxu0 %v508
    %v510 = vand.u32 %v102, 4294901760
    %511 = vmatpush.msra.mxu0 %v510
    %v512 = vand.u32 %v101, 4294901760
    %513 = vmatpush.msra.mxu0 %v512
    %v514 = vand.u32 %v100, 4294901760
    %515 = vmatpush.msra.mxu0 %v514
    %v516 = vand.u32 %v480, 4294901760
    %v517 = vsub.f32 %v480, %v516
    %v518 = vand.u32 %v517, 4294901760
    %v519 = vsub.f32 %v517, %v518
    %v520 = vand.u32 %v519, 4294901760
    %521 = vmatmul.f32.gmra.mxu0 %v520
    %v522 = vpop.f32.mrf.mxu0
    %v523 = vadd.f32 %v465, %v522
    %v524 = vand.u32 %v483, 4294901760
    %v525 = vsub.f32 %v483, %v524
    %v526 = vand.u32 %v525, 4294901760
    %v527 = vsub.f32 %v525, %v526
    %v528 = vand.u32 %v527, 4294901760
    %529 = vmatmul.f32.gmra.mxu0 %v528
    %v530 = vpop.f32.mrf.mxu0
    %v531 = vadd.f32 %v469, %v530
    %v532 = vand.u32 %v486, 4294901760
    %v533 = vsub.f32 %v486, %v532
    %v534 = vand.u32 %v533, 4294901760
    %v535 = vsub.f32 %v533, %v534
    %v536 = vand.u32 %v535, 4294901760
    %537 = vmatmul.f32.gmra.mxu0 %v536
    %v538 = vpop.f32.mrf.mxu0
    %v539 = vadd.f32 %v473, %v538
    %v540 = vand.u32 %v489, 4294901760
    %v541 = vsub.f32 %v489, %v540
    %v542 = vand.u32 %v541, 4294901760
    %v543 = vsub.f32 %v541, %v542
    %v544 = vand.u32 %v543, 4294901760
    %545 = vmatmul.f32.gmra.mxu0 %v544
    %v546 = vpop.f32.mrf.mxu0
    %v547 = vadd.f32 %v477, %v546
    %548 = vdwg.mxu0
    %549 = vmatpush.msra.mxu0 0.0
    %550 = vmatpush.msra.mxu0 0.0
    %551 = vmatpush.msra.mxu0 0.0
    %552 = vmatpush.msra.mxu0 0.0
    %553 = vmatpush.msra.mxu0 0.0
    %554 = vmatpush.msra.mxu0 0.0
    %555 = vmatpush.msra.mxu0 0.0
    %v556 = vand.u32 %v108, 4294901760
    %v557 = vsub.f32 %v108, %v556
    %v558 = vand.u32 %v557, 4294901760
    %v559 = vsub.f32 %v557, %v558
    %v560 = vand.u32 %v559, 4294901760
    %561 = vmatpush.msra.mxu0 %v560
    %v562 = vand.u32 %v107, 4294901760
    %v563 = vsub.f32 %v107, %v562
    %v564 = vand.u32 %v563, 4294901760
    %v565 = vsub.f32 %v563, %v564
    %v566 = vand.u32 %v565, 4294901760
    %567 = vmatpush.msra.mxu0 %v566
    %v568 = vand.u32 %v106, 4294901760
    %v569 = vsub.f32 %v106, %v568
    %v570 = vand.u32 %v569, 4294901760
    %v571 = vsub.f32 %v569, %v570
    %v572 = vand.u32 %v571, 4294901760
    %573 = vmatpush.msra.mxu0 %v572
    %v574 = vand.u32 %v105, 4294901760
    %v575 = vsub.f32 %v105, %v574
    %v576 = vand.u32 %v575, 4294901760
    %v577 = vsub.f32 %v575, %v576
    %v578 = vand.u32 %v577, 4294901760
    %579 = vmatpush.msra.mxu0 %v578
    %v580 = vand.u32 %v104, 4294901760
    %v581 = vsub.f32 %v104, %v580
    %v582 = vand.u32 %v581, 4294901760
    %v583 = vsub.f32 %v581, %v582
    %v584 = vand.u32 %v583, 4294901760
    %585 = vmatpush.msra.mxu0 %v584
    %v586 = vand.u32 %v103, 4294901760
    %v587 = vsub.f32 %v103, %v586
    %v588 = vand.u32 %v587, 4294901760
    %v589 = vsub.f32 %v587, %v588
    %v590 = vand.u32 %v589, 4294901760
    %591 = vmatpush.msra.mxu0 %v590
    %v592 = vand.u32 %v102, 4294901760
    %v593 = vsub.f32 %v102, %v592
    %v594 = vand.u32 %v593, 4294901760
    %v595 = vsub.f32 %v593, %v594
    %v596 = vand.u32 %v595, 4294901760
    %597 = vmatpush.msra.mxu0 %v596
    %v598 = vand.u32 %v101, 4294901760
    %v599 = vsub.f32 %v101, %v598
    %v600 = vand.u32 %v599, 4294901760
    %v601 = vsub.f32 %v599, %v600
    %v602 = vand.u32 %v601, 4294901760
    %603 = vmatpush.msra.mxu0 %v602
    %v604 = vand.u32 %v100, 4294901760
    %v605 = vsub.f32 %v100, %v604
    %v606 = vand.u32 %v605, 4294901760
    %v607 = vsub.f32 %v605, %v606
    %v608 = vand.u32 %v607, 4294901760
    %609 = vmatpush.msra.mxu0 %v608
    %v610 = vand.u32 %v480, 4294901760
    %611 = vmatmul.f32.gmra.mxu0 %v610
    %v612 = vpop.f32.mrf.mxu0
    %v613 = vadd.f32 %v523, %v612
    %v614 = vand.u32 %v483, 4294901760
    %615 = vmatmul.f32.gmra.mxu0 %v614
    %v616 = vpop.f32.mrf.mxu0
    %v617 = vadd.f32 %v531, %v616
    %v618 = vand.u32 %v486, 4294901760
    %619 = vmatmul.f32.gmra.mxu0 %v618
    %v620 = vpop.f32.mrf.mxu0
    %v621 = vadd.f32 %v539, %v620
    %v622 = vand.u32 %v489, 4294901760
    %623 = vmatmul.f32.gmra.mxu0 %v622
    %v624 = vpop.f32.mrf.mxu0
    %v625 = vadd.f32 %v547, %v624
    %626 = vdwg.mxu0
    %627 = vmatpush.msra.mxu0 0.0
    %628 = vmatpush.msra.mxu0 0.0
    %629 = vmatpush.msra.mxu0 0.0
    %630 = vmatpush.msra.mxu0 0.0
    %631 = vmatpush.msra.mxu0 0.0
    %632 = vmatpush.msra.mxu0 0.0
    %633 = vmatpush.msra.mxu0 0.0
    %v634 = vand.u32 %v108, 4294901760
    %v635 = vsub.f32 %v108, %v634
    %636 = vmatpush.msra.mxu0 %v635
    %v637 = vand.u32 %v107, 4294901760
    %v638 = vsub.f32 %v107, %v637
    %639 = vmatpush.msra.mxu0 %v638
    %v640 = vand.u32 %v106, 4294901760
    %v641 = vsub.f32 %v106, %v640
    %642 = vmatpush.msra.mxu0 %v641
    %v643 = vand.u32 %v105, 4294901760
    %v644 = vsub.f32 %v105, %v643
    %645 = vmatpush.msra.mxu0 %v644
    %v646 = vand.u32 %v104, 4294901760
    %v647 = vsub.f32 %v104, %v646
    %648 = vmatpush.msra.mxu0 %v647
    %v649 = vand.u32 %v103, 4294901760
    %v650 = vsub.f32 %v103, %v649
    %651 = vmatpush.msra.mxu0 %v650
    %v652 = vand.u32 %v102, 4294901760
    %v653 = vsub.f32 %v102, %v652
    %654 = vmatpush.msra.mxu0 %v653
    %v655 = vand.u32 %v101, 4294901760
    %v656 = vsub.f32 %v101, %v655
    %657 = vmatpush.msra.mxu0 %v656
    %v658 = vand.u32 %v100, 4294901760
    %v659 = vsub.f32 %v100, %v658
    %660 = vmatpush.msra.mxu0 %v659
    %v661 = vand.u32 %v480, 4294901760
    %v662 = vsub.f32 %v480, %v661
    %663 = vmatmul.f32.gmra.mxu0 %v662
    %v664 = vpop.f32.mrf.mxu0
    %v665 = vadd.f32 %v613, %v664
    %v666 = vand.u32 %v483, 4294901760
    %v667 = vsub.f32 %v483, %v666
    %668 = vmatmul.f32.gmra.mxu0 %v667
    %v669 = vpop.f32.mrf.mxu0
    %v670 = vadd.f32 %v617, %v669
    %v671 = vand.u32 %v486, 4294901760
    %v672 = vsub.f32 %v486, %v671
    %673 = vmatmul.f32.gmra.mxu0 %v672
    %v674 = vpop.f32.mrf.mxu0
    %v675 = vadd.f32 %v621, %v674
    %v676 = vand.u32 %v489, 4294901760
    %v677 = vsub.f32 %v489, %v676
    %678 = vmatmul.f32.gmra.mxu0 %v677
    %v679 = vpop.f32.mrf.mxu0
    %v680 = vadd.f32 %v625, %v679
    %681 = vdwg.mxu0
    %682 = vmatpush.msra.mxu0 0.0
    %683 = vmatpush.msra.mxu0 0.0
    %684 = vmatpush.msra.mxu0 0.0
    %685 = vmatpush.msra.mxu0 0.0
    %686 = vmatpush.msra.mxu0 0.0
    %687 = vmatpush.msra.mxu0 0.0
    %688 = vmatpush.msra.mxu0 0.0
    %v689 = vand.u32 %v108, 4294901760
    %690 = vmatpush.msra.mxu0 %v689
    %v691 = vand.u32 %v107, 4294901760
    %692 = vmatpush.msra.mxu0 %v691
    %v693 = vand.u32 %v106, 4294901760
    %694 = vmatpush.msra.mxu0 %v693
    %v695 = vand.u32 %v105, 4294901760
    %696 = vmatpush.msra.mxu0 %v695
    %v697 = vand.u32 %v104, 4294901760
    %698 = vmatpush.msra.mxu0 %v697
    %v699 = vand.u32 %v103, 4294901760
    %700 = vmatpush.msra.mxu0 %v699
    %v701 = vand.u32 %v102, 4294901760
    %702 = vmatpush.msra.mxu0 %v701
    %v703 = vand.u32 %v101, 4294901760
    %704 = vmatpush.msra.mxu0 %v703
    %v705 = vand.u32 %v100, 4294901760
    %706 = vmatpush.msra.mxu0 %v705
    %v707 = vand.u32 %v480, 4294901760
    %v708 = vsub.f32 %v480, %v707
    %v709 = vand.u32 %v708, 4294901760
    %710 = vmatmul.f32.gmra.mxu0 %v709
    %v711 = vpop.f32.mrf.mxu0
    %v712 = vadd.f32 %v665, %v711
    %v713 = vand.u32 %v483, 4294901760
    %v714 = vsub.f32 %v483, %v713
    %v715 = vand.u32 %v714, 4294901760
    %716 = vmatmul.f32.gmra.mxu0 %v715
    %v717 = vpop.f32.mrf.mxu0
    %v718 = vadd.f32 %v670, %v717
    %v719 = vand.u32 %v486, 4294901760
    %v720 = vsub.f32 %v486, %v719
    %v721 = vand.u32 %v720, 4294901760
    %722 = vmatmul.f32.gmra.mxu0 %v721
    %v723 = vpop.f32.mrf.mxu0
    %v724 = vadd.f32 %v675, %v723
    %v725 = vand.u32 %v489, 4294901760
    %v726 = vsub.f32 %v489, %v725
    %v727 = vand.u32 %v726, 4294901760
    %728 = vmatmul.f32.gmra.mxu0 %v727
    %v729 = vpop.f32.mrf.mxu0
    %v730 = vadd.f32 %v680, %v729
    %731 = vdwg.mxu0
    %732 = vmatpush.msra.mxu0 0.0
    %733 = vmatpush.msra.mxu0 0.0
    %734 = vmatpush.msra.mxu0 0.0
    %735 = vmatpush.msra.mxu0 0.0
    %736 = vmatpush.msra.mxu0 0.0
    %737 = vmatpush.msra.mxu0 0.0
    %738 = vmatpush.msra.mxu0 0.0
    %v739 = vand.u32 %v108, 4294901760
    %v740 = vsub.f32 %v108, %v739
    %v741 = vand.u32 %v740, 4294901760
    %742 = vmatpush.msra.mxu0 %v741
    %v743 = vand.u32 %v107, 4294901760
    %v744 = vsub.f32 %v107, %v743
    %v745 = vand.u32 %v744, 4294901760
    %746 = vmatpush.msra.mxu0 %v745
    %v747 = vand.u32 %v106, 4294901760
    %v748 = vsub.f32 %v106, %v747
    %v749 = vand.u32 %v748, 4294901760
    %750 = vmatpush.msra.mxu0 %v749
    %v751 = vand.u32 %v105, 4294901760
    %v752 = vsub.f32 %v105, %v751
    %v753 = vand.u32 %v752, 4294901760
    %754 = vmatpush.msra.mxu0 %v753
    %v755 = vand.u32 %v104, 4294901760
    %v756 = vsub.f32 %v104, %v755
    %v757 = vand.u32 %v756, 4294901760
    %758 = vmatpush.msra.mxu0 %v757
    %v759 = vand.u32 %v103, 4294901760
    %v760 = vsub.f32 %v103, %v759
    %v761 = vand.u32 %v760, 4294901760
    %762 = vmatpush.msra.mxu0 %v761
    %v763 = vand.u32 %v102, 4294901760
    %v764 = vsub.f32 %v102, %v763
    %v765 = vand.u32 %v764, 4294901760
    %766 = vmatpush.msra.mxu0 %v765
    %v767 = vand.u32 %v101, 4294901760
    %v768 = vsub.f32 %v101, %v767
    %v769 = vand.u32 %v768, 4294901760
    %770 = vmatpush.msra.mxu0 %v769
    %v771 = vand.u32 %v100, 4294901760
    %v772 = vsub.f32 %v100, %v771
    %v773 = vand.u32 %v772, 4294901760
    %774 = vmatpush.msra.mxu0 %v773
    %v775 = vand.u32 %v480, 4294901760
    %776 = vmatmul.f32.gmra.mxu0 %v775
    %v777 = vpop.f32.mrf.mxu0
    %v778 = vadd.f32 %v712, %v777
    %v779 = vand.u32 %v483, 4294901760
    %780 = vmatmul.f32.gmra.mxu0 %v779
    %v781 = vpop.f32.mrf.mxu0
    %v782 = vadd.f32 %v718, %v781
    %v783 = vand.u32 %v486, 4294901760
    %784 = vmatmul.f32.gmra.mxu0 %v783
    %v785 = vpop.f32.mrf.mxu0
    %v786 = vadd.f32 %v724, %v785
    %v787 = vand.u32 %v489, 4294901760
    %788 = vmatmul.f32.gmra.mxu0 %v787
    %v789 = vpop.f32.mrf.mxu0
    %v790 = vadd.f32 %v730, %v789
    %791 = vdwg.mxu0
    %792 = vmatpush.msra.mxu0 0.0
    %793 = vmatpush.msra.mxu0 0.0
    %794 = vmatpush.msra.mxu0 0.0
    %795 = vmatpush.msra.mxu0 0.0
    %796 = vmatpush.msra.mxu0 0.0
    %797 = vmatpush.msra.mxu0 0.0
    %798 = vmatpush.msra.mxu0 0.0
    %v799 = vand.u32 %v108, 4294901760
    %800 = vmatpush.msra.mxu0 %v799
    %v801 = vand.u32 %v107, 4294901760
    %802 = vmatpush.msra.mxu0 %v801
    %v803 = vand.u32 %v106, 4294901760
    %804 = vmatpush.msra.mxu0 %v803
    %v805 = vand.u32 %v105, 4294901760
    %806 = vmatpush.msra.mxu0 %v805
    %v807 = vand.u32 %v104, 4294901760
    %808 = vmatpush.msra.mxu0 %v807
    %v809 = vand.u32 %v103, 4294901760
    %810 = vmatpush.msra.mxu0 %v809
    %v811 = vand.u32 %v102, 4294901760
    %812 = vmatpush.msra.mxu0 %v811
    %v813 = vand.u32 %v101, 4294901760
    %814 = vmatpush.msra.mxu0 %v813
    %v815 = vand.u32 %v100, 4294901760
    %816 = vmatpush.msra.mxu0 %v815
    %v817 = vand.u32 %v480, 4294901760
    %818 = vmatmul.f32.gmra.mxu0 %v817
    %v819 = vpop.f32.mrf.mxu0
    %v820 = vadd.f32 %v778, %v819
    %v821 = vand.u32 %v483, 4294901760
    %822 = vmatmul.f32.gmra.mxu0 %v821
    %v823 = vpop.f32.mrf.mxu0
    %v824 = vadd.f32 %v782, %v823
    %v825 = vand.u32 %v486, 4294901760
    %826 = vmatmul.f32.gmra.mxu0 %v825
    %v827 = vpop.f32.mrf.mxu0
    %v828 = vadd.f32 %v786, %v827
    %v829 = vand.u32 %v489, 4294901760
    %830 = vmatmul.f32.gmra.mxu0 %v829
    %v831 = vpop.f32.mrf.mxu0
    %v832 = vadd.f32 %v790, %v831
    %833 = vdwg.mxu0
    %v834 = vld [vmem:[#allocation2 + $0x2] sm:$0xff]
    %v835 = vld [vmem:[#allocation2 + $0xa] sm:$0xff]
    %v836 = vld [vmem:[#allocation2 + $0x1a] sm:$0xff]
    %v837 = vld [vmem:[#allocation2 + $0x22] sm:$0xff]
    %s838 = scalar_lea.vmem [#allocation7], 144
    %v839 = vld [vmem:[%s838] sm:$0xff]
    %v840 = vld [vmem:[%s838 + $0x8] sm:$0xff]
    %v841 = vld [vmem:[%s838 + $0x10] sm:$0xff]
    %v842 = vld [vmem:[%s838 + $0x18] sm:$0xff]
    %v843 = vld [vmem:[%s838 + $0x20] sm:$0xff]
    %v844 = vld [vmem:[%s838 + $0x28] sm:$0xff]
    %v845 = vld [vmem:[%s838 + $0x30] sm:$0xff]
    %v846 = vld [vmem:[%s838 + $0x38] sm:$0xff]
    %v847 = vld [vmem:[%s838 + $0x40] sm:$0xff]
    %v849 = vsel %vm123, %v834, 0
    %v852 = vsel %vm123, %v835, 0
    %v855 = vsel %vm123, %v836, 0
    %v858 = vsel %vm123, %v837, 0
    %860 = vmatpush.msra.mxu0 0.0
    %861 = vmatpush.msra.mxu0 0.0
    %862 = vmatpush.msra.mxu0 0.0
    %863 = vmatpush.msra.mxu0 0.0
    %864 = vmatpush.msra.mxu0 0.0
    %865 = vmatpush.msra.mxu0 0.0
    %866 = vmatpush.msra.mxu0 0.0
    %v867 = vand.u32 %v847, 4294901760
    %868 = vmatpush.msra.mxu0 %v867
    %v869 = vand.u32 %v846, 4294901760
    %870 = vmatpush.msra.mxu0 %v869
    %v871 = vand.u32 %v845, 4294901760
    %872 = vmatpush.msra.mxu0 %v871
    %v873 = vand.u32 %v844, 4294901760
    %874 = vmatpush.msra.mxu0 %v873
    %v875 = vand.u32 %v843, 4294901760
    %876 = vmatpush.msra.mxu0 %v875
    %v877 = vand.u32 %v842, 4294901760
    %878 = vmatpush.msra.mxu0 %v877
    %v879 = vand.u32 %v841, 4294901760
    %880 = vmatpush.msra.mxu0 %v879
    %v881 = vand.u32 %v840, 4294901760
    %882 = vmatpush.msra.mxu0 %v881
    %v883 = vand.u32 %v839, 4294901760
    %884 = vmatpush.msra.mxu0 %v883
    %v885 = vand.u32 %v849, 4294901760
    %v886 = vsub.f32 %v849, %v885
    %v887 = vand.u32 %v886, 4294901760
    %v888 = vsub.f32 %v886, %v887
    %v889 = vand.u32 %v888, 4294901760
    %890 = vmatmul.f32.gmra.mxu0 %v889
    %v891 = vpop.f32.mrf.mxu0
    %v892 = vadd.f32 0.0, %v891
    %v893 = vand.u32 %v852, 4294901760
    %v894 = vsub.f32 %v852, %v893
    %v895 = vand.u32 %v894, 4294901760
    %v896 = vsub.f32 %v894, %v895
    %v897 = vand.u32 %v896, 4294901760
    %898 = vmatmul.f32.gmra.mxu0 %v897
    %v899 = vpop.f32.mrf.mxu0
    %v900 = vadd.f32 0.0, %v899
    %v901 = vand.u32 %v855, 4294901760
    %v902 = vsub.f32 %v855, %v901
    %v903 = vand.u32 %v902, 4294901760
    %v904 = vsub.f32 %v902, %v903
    %v905 = vand.u32 %v904, 4294901760
    %906 = vmatmul.f32.gmra.mxu0 %v905
    %v907 = vpop.f32.mrf.mxu0
    %v908 = vadd.f32 0.0, %v907
    %v909 = vand.u32 %v858, 4294901760
    %v910 = vsub.f32 %v858, %v909
    %v911 = vand.u32 %v910, 4294901760
    %v912 = vsub.f32 %v910, %v911
    %v913 = vand.u32 %v912, 4294901760
    %914 = vmatmul.f32.gmra.mxu0 %v913
    %v915 = vpop.f32.mrf.mxu0
    %v916 = vadd.f32 0.0, %v915
    %917 = vdwg.mxu0
    %918 = vmatpush.msra.mxu0 0.0
    %919 = vmatpush.msra.mxu0 0.0
    %920 = vmatpush.msra.mxu0 0.0
    %921 = vmatpush.msra.mxu0 0.0
    %922 = vmatpush.msra.mxu0 0.0
    %923 = vmatpush.msra.mxu0 0.0
    %924 = vmatpush.msra.mxu0 0.0
    %v925 = vand.u32 %v847, 4294901760
    %v926 = vsub.f32 %v847, %v925
    %v927 = vand.u32 %v926, 4294901760
    %v928 = vsub.f32 %v926, %v927
    %v929 = vand.u32 %v928, 4294901760
    %930 = vmatpush.msra.mxu0 %v929
    %v931 = vand.u32 %v846, 4294901760
    %v932 = vsub.f32 %v846, %v931
    %v933 = vand.u32 %v932, 4294901760
    %v934 = vsub.f32 %v932, %v933
    %v935 = vand.u32 %v934, 4294901760
    %936 = vmatpush.msra.mxu0 %v935
    %v937 = vand.u32 %v845, 4294901760
    %v938 = vsub.f32 %v845, %v937
    %v939 = vand.u32 %v938, 4294901760
    %v940 = vsub.f32 %v938, %v939
    %v941 = vand.u32 %v940, 4294901760
    %942 = vmatpush.msra.mxu0 %v941
    %v943 = vand.u32 %v844, 4294901760
    %v944 = vsub.f32 %v844, %v943
    %v945 = vand.u32 %v944, 4294901760
    %v946 = vsub.f32 %v944, %v945
    %v947 = vand.u32 %v946, 4294901760
    %948 = vmatpush.msra.mxu0 %v947
    %v949 = vand.u32 %v843, 4294901760
    %v950 = vsub.f32 %v843, %v949
    %v951 = vand.u32 %v950, 4294901760
    %v952 = vsub.f32 %v950, %v951
    %v953 = vand.u32 %v952, 4294901760
    %954 = vmatpush.msra.mxu0 %v953
    %v955 = vand.u32 %v842, 4294901760
    %v956 = vsub.f32 %v842, %v955
    %v957 = vand.u32 %v956, 4294901760
    %v958 = vsub.f32 %v956, %v957
    %v959 = vand.u32 %v958, 4294901760
    %960 = vmatpush.msra.mxu0 %v959
    %v961 = vand.u32 %v841, 4294901760
    %v962 = vsub.f32 %v841, %v961
    %v963 = vand.u32 %v962, 4294901760
    %v964 = vsub.f32 %v962, %v963
    %v965 = vand.u32 %v964, 4294901760
    %966 = vmatpush.msra.mxu0 %v965
    %v967 = vand.u32 %v840, 4294901760
    %v968 = vsub.f32 %v840, %v967
    %v969 = vand.u32 %v968, 4294901760
    %v970 = vsub.f32 %v968, %v969
    %v971 = vand.u32 %v970, 4294901760
    %972 = vmatpush.msra.mxu0 %v971
    %v973 = vand.u32 %v839, 4294901760
    %v974 = vsub.f32 %v839, %v973
    %v975 = vand.u32 %v974, 4294901760
    %v976 = vsub.f32 %v974, %v975
    %v977 = vand.u32 %v976, 4294901760
    %978 = vmatpush.msra.mxu0 %v977
    %v979 = vand.u32 %v849, 4294901760
    %980 = vmatmul.f32.gmra.mxu0 %v979
    %v981 = vpop.f32.mrf.mxu0
    %v982 = vadd.f32 %v892, %v981
    %v983 = vand.u32 %v852, 4294901760
    %984 = vmatmul.f32.gmra.mxu0 %v983
    %v985 = vpop.f32.mrf.mxu0
    %v986 = vadd.f32 %v900, %v985
    %v987 = vand.u32 %v855, 4294901760
    %988 = vmatmul.f32.gmra.mxu0 %v987
    %v989 = vpop.f32.mrf.mxu0
    %v990 = vadd.f32 %v908, %v989
    %v991 = vand.u32 %v858, 4294901760
    %992 = vmatmul.f32.gmra.mxu0 %v991
    %v993 = vpop.f32.mrf.mxu0
    %v994 = vadd.f32 %v916, %v993
    %995 = vdwg.mxu0
    %996 = vmatpush.msra.mxu0 0.0
    %997 = vmatpush.msra.mxu0 0.0
    %998 = vmatpush.msra.mxu0 0.0
    %999 = vmatpush.msra.mxu0 0.0
    %1000 = vmatpush.msra.mxu0 0.0
    %1001 = vmatpush.msra.mxu0 0.0
    %1002 = vmatpush.msra.mxu0 0.0
    %v1003 = vand.u32 %v847, 4294901760
    %v1004 = vsub.f32 %v847, %v1003
    %1005 = vmatpush.msra.mxu0 %v1004
    %v1006 = vand.u32 %v846, 4294901760
    %v1007 = vsub.f32 %v846, %v1006
    %1008 = vmatpush.msra.mxu0 %v1007
    %v1009 = vand.u32 %v845, 4294901760
    %v1010 = vsub.f32 %v845, %v1009
    %1011 = vmatpush.msra.mxu0 %v1010
    %v1012 = vand.u32 %v844, 4294901760
    %v1013 = vsub.f32 %v844, %v1012
    %1014 = vmatpush.msra.mxu0 %v1013
    %v1015 = vand.u32 %v843, 4294901760
    %v1016 = vsub.f32 %v843, %v1015
    %1017 = vmatpush.msra.mxu0 %v1016
    %v1018 = vand.u32 %v842, 4294901760
    %v1019 = vsub.f32 %v842, %v1018
    %1020 = vmatpush.msra.mxu0 %v1019
    %v1021 = vand.u32 %v841, 4294901760
    %v1022 = vsub.f32 %v841, %v1021
    %1023 = vmatpush.msra.mxu0 %v1022
    %v1024 = vand.u32 %v840, 4294901760
    %v1025 = vsub.f32 %v840, %v1024
    %1026 = vmatpush.msra.mxu0 %v1025
    %v1027 = vand.u32 %v839, 4294901760
    %v1028 = vsub.f32 %v839, %v1027
    %1029 = vmatpush.msra.mxu0 %v1028
    %v1030 = vand.u32 %v849, 4294901760
    %v1031 = vsub.f32 %v849, %v1030
    %1032 = vmatmul.f32.gmra.mxu0 %v1031
    %v1033 = vpop.f32.mrf.mxu0
    %v1034 = vadd.f32 %v982, %v1033
    %v1035 = vand.u32 %v852, 4294901760
    %v1036 = vsub.f32 %v852, %v1035
    %1037 = vmatmul.f32.gmra.mxu0 %v1036
    %v1038 = vpop.f32.mrf.mxu0
    %v1039 = vadd.f32 %v986, %v1038
    %v1040 = vand.u32 %v855, 4294901760
    %v1041 = vsub.f32 %v855, %v1040
    %1042 = vmatmul.f32.gmra.mxu0 %v1041
    %v1043 = vpop.f32.mrf.mxu0
    %v1044 = vadd.f32 %v990, %v1043
    %v1045 = vand.u32 %v858, 4294901760
    %v1046 = vsub.f32 %v858, %v1045
    %1047 = vmatmul.f32.gmra.mxu0 %v1046
    %v1048 = vpop.f32.mrf.mxu0
    %v1049 = vadd.f32 %v994, %v1048
    %1050 = vdwg.mxu0
    %1051 = vmatpush.msra.mxu0 0.0
    %1052 = vmatpush.msra.mxu0 0.0
    %1053 = vmatpush.msra.mxu0 0.0
    %1054 = vmatpush.msra.mxu0 0.0
    %1055 = vmatpush.msra.mxu0 0.0
    %1056 = vmatpush.msra.mxu0 0.0
    %1057 = vmatpush.msra.mxu0 0.0
    %v1058 = vand.u32 %v847, 4294901760
    %1059 = vmatpush.msra.mxu0 %v1058
    %v1060 = vand.u32 %v846, 4294901760
    %1061 = vmatpush.msra.mxu0 %v1060
    %v1062 = vand.u32 %v845, 4294901760
    %1063 = vmatpush.msra.mxu0 %v1062
    %v1064 = vand.u32 %v844, 4294901760
    %1065 = vmatpush.msra.mxu0 %v1064
    %v1066 = vand.u32 %v843, 4294901760
    %1067 = vmatpush.msra.mxu0 %v1066
    %v1068 = vand.u32 %v842, 4294901760
    %1069 = vmatpush.msra.mxu0 %v1068
    %v1070 = vand.u32 %v841, 4294901760
    %1071 = vmatpush.msra.mxu0 %v1070
    %v1072 = vand.u32 %v840, 4294901760
    %1073 = vmatpush.msra.mxu0 %v1072
    %v1074 = vand.u32 %v839, 4294901760
    %1075 = vmatpush.msra.mxu0 %v1074
    %v1076 = vand.u32 %v849, 4294901760
    %v1077 = vsub.f32 %v849, %v1076
    %v1078 = vand.u32 %v1077, 4294901760
    %1079 = vmatmul.f32.gmra.mxu0 %v1078
    %v1080 = vpop.f32.mrf.mxu0
    %v1081 = vadd.f32 %v1034, %v1080
    %v1082 = vand.u32 %v852, 4294901760
    %v1083 = vsub.f32 %v852, %v1082
    %v1084 = vand.u32 %v1083, 4294901760
    %1085 = vmatmul.f32.gmra.mxu0 %v1084
    %v1086 = vpop.f32.mrf.mxu0
    %v1087 = vadd.f32 %v1039, %v1086
    %v1088 = vand.u32 %v855, 4294901760
    %v1089 = vsub.f32 %v855, %v1088
    %v1090 = vand.u32 %v1089, 4294901760
    %1091 = vmatmul.f32.gmra.mxu0 %v1090
    %v1092 = vpop.f32.mrf.mxu0
    %v1093 = vadd.f32 %v1044, %v1092
    %v1094 = vand.u32 %v858, 4294901760
    %v1095 = vsub.f32 %v858, %v1094
    %v1096 = vand.u32 %v1095, 4294901760
    %1097 = vmatmul.f32.gmra.mxu0 %v1096
    %v1098 = vpop.f32.mrf.mxu0
    %v1099 = vadd.f32 %v1049, %v1098
    %1100 = vdwg.mxu0
    %1101 = vmatpush.msra.mxu0 0.0
    %1102 = vmatpush.msra.mxu0 0.0
    %1103 = vmatpush.msra.mxu0 0.0
    %1104 = vmatpush.msra.mxu0 0.0
    %1105 = vmatpush.msra.mxu0 0.0
    %1106 = vmatpush.msra.mxu0 0.0
    %1107 = vmatpush.msra.mxu0 0.0
    %v1108 = vand.u32 %v847, 4294901760
    %v1109 = vsub.f32 %v847, %v1108
    %v1110 = vand.u32 %v1109, 4294901760
    %1111 = vmatpush.msra.mxu0 %v1110
    %v1112 = vand.u32 %v846, 4294901760
    %v1113 = vsub.f32 %v846, %v1112
    %v1114 = vand.u32 %v1113, 4294901760
    %1115 = vmatpush.msra.mxu0 %v1114
    %v1116 = vand.u32 %v845, 4294901760
    %v1117 = vsub.f32 %v845, %v1116
    %v1118 = vand.u32 %v1117, 4294901760
    %1119 = vmatpush.msra.mxu0 %v1118
    %v1120 = vand.u32 %v844, 4294901760
    %v1121 = vsub.f32 %v844, %v1120
    %v1122 = vand.u32 %v1121, 4294901760
    %1123 = vmatpush.msra.mxu0 %v1122
    %v1124 = vand.u32 %v843, 4294901760
    %v1125 = vsub.f32 %v843, %v1124
    %v1126 = vand.u32 %v1125, 4294901760
    %1127 = vmatpush.msra.mxu0 %v1126
    %v1128 = vand.u32 %v842, 4294901760
    %v1129 = vsub.f32 %v842, %v1128
    %v1130 = vand.u32 %v1129, 4294901760
    %1131 = vmatpush.msra.mxu0 %v1130
    %v1132 = vand.u32 %v841, 4294901760
    %v1133 = vsub.f32 %v841, %v1132
    %v1134 = vand.u32 %v1133, 4294901760
    %1135 = vmatpush.msra.mxu0 %v1134
    %v1136 = vand.u32 %v840, 4294901760
    %v1137 = vsub.f32 %v840, %v1136
    %v1138 = vand.u32 %v1137, 4294901760
    %1139 = vmatpush.msra.mxu0 %v1138
    %v1140 = vand.u32 %v839, 4294901760
    %v1141 = vsub.f32 %v839, %v1140
    %v1142 = vand.u32 %v1141, 4294901760
    %1143 = vmatpush.msra.mxu0 %v1142
    %v1144 = vand.u32 %v849, 4294901760
    %1145 = vmatmul.f32.gmra.mxu0 %v1144
    %v1146 = vpop.f32.mrf.mxu0
    %v1147 = vadd.f32 %v1081, %v1146
    %v1148 = vand.u32 %v852, 4294901760
    %1149 = vmatmul.f32.gmra.mxu0 %v1148
    %v1150 = vpop.f32.mrf.mxu0
    %v1151 = vadd.f32 %v1087, %v1150
    %v1152 = vand.u32 %v855, 4294901760
    %1153 = vmatmul.f32.gmra.mxu0 %v1152
    %v1154 = vpop.f32.mrf.mxu0
    %v1155 = vadd.f32 %v1093, %v1154
    %v1156 = vand.u32 %v858, 4294901760
    %1157 = vmatmul.f32.gmra.mxu0 %v1156
    %v1158 = vpop.f32.mrf.mxu0
    %v1159 = vadd.f32 %v1099, %v1158
    %1160 = vdwg.mxu0
    %1161 = vmatpush.msra.mxu0 0.0
    %1162 = vmatpush.msra.mxu0 0.0
    %1163 = vmatpush.msra.mxu0 0.0
    %1164 = vmatpush.msra.mxu0 0.0
    %1165 = vmatpush.msra.mxu0 0.0
    %1166 = vmatpush.msra.mxu0 0.0
    %1167 = vmatpush.msra.mxu0 0.0
    %v1168 = vand.u32 %v847, 4294901760
    %1169 = vmatpush.msra.mxu0 %v1168
    %v1170 = vand.u32 %v846, 4294901760
    %1171 = vmatpush.msra.mxu0 %v1170
    %v1172 = vand.u32 %v845, 4294901760
    %1173 = vmatpush.msra.mxu0 %v1172
    %v1174 = vand.u32 %v844, 4294901760
    %1175 = vmatpush.msra.mxu0 %v1174
    %v1176 = vand.u32 %v843, 4294901760
    %1177 = vmatpush.msra.mxu0 %v1176
    %v1178 = vand.u32 %v842, 4294901760
    %1179 = vmatpush.msra.mxu0 %v1178
    %v1180 = vand.u32 %v841, 4294901760
    %1181 = vmatpush.msra.mxu0 %v1180
    %v1182 = vand.u32 %v840, 4294901760
    %1183 = vmatpush.msra.mxu0 %v1182
    %v1184 = vand.u32 %v839, 4294901760
    %1185 = vmatpush.msra.mxu0 %v1184
    %v1186 = vand.u32 %v849, 4294901760
    %1187 = vmatmul.f32.gmra.mxu0 %v1186
    %v1188 = vpop.f32.mrf.mxu0
    %v1189 = vadd.f32 %v1147, %v1188
    %v1190 = vand.u32 %v852, 4294901760
    %1191 = vmatmul.f32.gmra.mxu0 %v1190
    %v1192 = vpop.f32.mrf.mxu0
    %v1193 = vadd.f32 %v1151, %v1192
    %v1194 = vand.u32 %v855, 4294901760
    %1195 = vmatmul.f32.gmra.mxu0 %v1194
    %v1196 = vpop.f32.mrf.mxu0
    %v1197 = vadd.f32 %v1155, %v1196
    %v1198 = vand.u32 %v858, 4294901760
    %1199 = vmatmul.f32.gmra.mxu0 %v1198
    %v1200 = vpop.f32.mrf.mxu0
    %v1201 = vadd.f32 %v1159, %v1200
    %1202 = vdwg.mxu0
    %v1203 = vadd.f32 %v820, %v1189
    %v1204 = vadd.f32 %v824, %v1193
    %v1205 = vadd.f32 %v828, %v1197
    %v1206 = vadd.f32 %v832, %v1201
    %v1207 = vld [vmem:[%s2] sm:$0x1]
    %v1209 = vperm.slane %v1207, 0
    %v1211 = vmul.f32 %v1203, %v1209
    %v1212 = vmul.f32 %v1204, %v1209
    %v1213 = vmul.f32 %v1205, %v1209
    %v1214 = vmul.f32 %v1206, %v1209
    %v1215 = vld [vmem:[%s3] sm:$0x1]
    %v1217 = vperm.slane %v1215, 0
    %v1219 = vadd.f32 %v1211, %v1217
    %v1220 = vadd.f32 %v1212, %v1217
    %v1221 = vadd.f32 %v1213, %v1217
    %v1222 = vadd.f32 %v1214, %v1217
    %1223 = vst [vmem:[#allocation3] sm:$0xff] %v1219
    %1224 = vst [vmem:[#allocation3 + $0x8] sm:$0xff] %v1220
    %1225 = vst [vmem:[#allocation3 + $0x10] sm:$0xff] %v1221
    %1226 = vst [vmem:[#allocation3 + $0x18] sm:$0xff] %v1222
    %v1227 = vld [vmem:[#allocation3] ss:$2 sm:$0xff]
    %s1228 = scalar_lea.vmem [#allocation3], 16
    %v1229 = vld [vmem:[%s1228] ss:$2 sm:$0xff]
    %s1230 = scalar_lea.vmem [#allocation3], 1
    %v1231 = vld [vmem:[%s1230] ss:$2 sm:$0xff]
    %s1232 = scalar_lea.vmem [#allocation3], 17
    %v1233 = vld [vmem:[%s1232] ss:$2 sm:$0xff]
    %v1234 = vmax.f32 %v1227, %v1231
    %v1235 = vmax.f32 %v1229, %v1233
    %1238 = vrot.lane.b32.xlu0 %v1234, 64
    %v1239 = vpop.permute.xlu0 %1238
    %1240 = vrot.lane.b32.xlu0 %v1235, 64
    %v1241 = vpop.permute.xlu0 %1240
    %v1244 = vmax.f32 %v1234, %v1239
    %v1245 = vmax.f32 %v1235, %v1241
    %v1246 = vmax.f32 %v1244, 0.0
    %v1247 = vmax.f32 %v1245, 0.0
    %vm1248 = vcmask 523264
    %1249 = vst.msk [vmem:[#allocation9] sm:$0xff] %vm1248, %v1246
    %1250 = vst.msk [vmem:[#allocation9 + $0x8] sm:$0xff] %vm1248, %v1247
    // Predicated region
    $region26: #{tpu_custom_call.1} parent=1 // pred_check
      _
    $region27: #{tpu_custom_call.1} parent=1 // pred_check_branch
      %1252 = sbr.rel (0) target = $region29
    $region28: #{tpu_custom_call.1} parent=1 // pred_region
      %1254 = vsyncadd [#allocation6], 0
      %s1255 = sshll.u32 [#allocation9], 4
      %s1256 = int_to_ptr.vmem [resolvable:$true] %s1255
      %s1257 = sshll.u32 %s4, 4
      %s1258 = int_to_ptr.hbm [resolvable:$true] %s1257
      %1263 = dma.vmem_to_hbm [thread:$0]  %s1256, 256, %s1258, [#allocation6], 128, 128, 8
    $region29: #{tpu_custom_call.1} parent=1 // pred_fallthru
      _
    // Predicated region
    $region30: #{tpu_custom_call.1} parent=1 // pred_check
      _
    $region31: #{tpu_custom_call.1} parent=1 // pred_check_branch
      %1265 = sbr.rel (0) target = $region33
    $region32: #{tpu_custom_call.1} parent=1 // pred_region
      %1267 = dma.done [#allocation6], 256
    $region33: #{tpu_custom_call.1} parent=1 // pred_fallthru
      _
    %1268 = vsyncpa [#allocation5], 1
    %1269 = vsyncpa [#allocation8], 1
    %1270 = vsyncpa [#allocation6], 1

</llo_original>
